<compile_context>
chip_gen: v7x
topology: tpu7x:2x2x1
jax: 0.10.0
libtpu: 0.0.40
codegen_flags: <defaults>
</compile_context>

<pallas_src>
import functools

import jax
import jax.numpy as jnp
from jax import lax
from jax.experimental import pallas as pl
from jax.experimental.pallas import tpu as pltpu


# --------------------------------------------------------------------------
# Kernel body
# --------------------------------------------------------------------------
def _layernorm_kernel(x_ref, g_ref, b_ref, o_ref, *, eps):
    # x_ref / o_ref: (nb, C, tile_T) slab; g_ref / b_ref: (C, 1) resident.
    x = x_ref[...].astype(jnp.float32)                    # (nb, C, tT)
    g = g_ref[...].astype(jnp.float32)[jnp.newaxis]       # (1, C, 1)
    b = b_ref[...].astype(jnp.float32)[jnp.newaxis]       # (1, C, 1)

    mean = jnp.mean(x, axis=1, keepdims=True)             # (nb, 1, tT) sublane reduce
    centered = x - mean
    var = jnp.mean(centered * centered, axis=1, keepdims=True)
    inv = lax.rsqrt(var + eps)                            # (nb, 1, tT)

    o_ref[...] = (centered * inv * g + b).astype(o_ref.dtype)


# --------------------------------------------------------------------------
# Generation-aware sizing helpers
# --------------------------------------------------------------------------
_GEN_PARAMS = {
    # gen: (tile budget bytes, default scoped VMEM, physical VMEM)
    "v5e": (10 << 20, 16 << 20, 128 << 20),
    "v6e": (22 << 20, 32 << 20, 128 << 20),
    "v7x": (22 << 20, 32 << 20, 64 << 20),
    "unknown": (12 << 20, 16 << 20, 64 << 20),
}


def _tpu_generation():
    try:
        kind = jax.devices()[0].device_kind.lower()
    except Exception:
        return "unknown"
    if "v5 lite" in kind or "v5e" in kind or "v5lite" in kind:
        return "v5e"
    if "v6" in kind:
        return "v6e"
    if "v7" in kind:
        return "v7x"
    return "unknown"


def _physical_vmem_bytes(default_bytes):
    # Prefer the trace-time hardware query when available; fall back to the
    # per-generation table otherwise.
    try:
        info = pltpu.get_tpu_info()
        cap = getattr(info, "vmem_capacity_bytes", None)
        if cap:
            return int(cap)
    except Exception:
        pass
    return default_bytes


def _choose_tiles(B, C, T, itemsize, budget_bytes):
    """Pick (nb, tile_T) and report bytes held in flight per (batch, lane)
    column.

    Per column we count: double-buffered input block (2*itemsize),
    double-buffered output block (2*itemsize) and ~3 tile-sized f32
    temporaries the body creates (x_f32, centered, y) => +12 bytes.
    """
    per_col = C * (4 * itemsize + 12)

    if T <= 128:
        tile_t = T                                  # full lane extent (== dim)
    else:
        max_cols = max(128, (budget_bytes // per_col) // 128 * 128)
        tile_t = int(min(max_cols, (T // 128) * 128))

    per_block = tile_t * per_col
    nb = int(max(1, min(B, budget_bytes // max(per_block, 1))))
    return nb, tile_t, per_col


# --------------------------------------------------------------------------
# Wrapper
# --------------------------------------------------------------------------
def layer_norm_pallas(x, gamma, beta, eps=1e-5):
    """x: (B, C, T); gamma, beta: (C,). Returns (B, C, T)."""
    B, C, T = x.shape
    itemsize = jnp.dtype(x.dtype).itemsize

    gen = _tpu_generation()
    budget_bytes, default_scoped, physical_default = _GEN_PARAMS[gen]
    physical = _physical_vmem_bytes(physical_default)

    nb, tile_t, per_col = _choose_tiles(B, C, T, itemsize, budget_bytes)
    grid = (pl.cdiv(B, nb), pl.cdiv(T, tile_t))

    # Real in-flight footprint (blocks + f32 temps + resident gamma/beta),
    # with headroom; also covers the large-C fallback where the 128-lane
    # minimum tile exceeds the nominal budget.
    footprint = nb * tile_t * per_col + 4 * C * jnp.dtype(gamma.dtype).itemsize
    vmem_limit = max(default_scoped, footprint + footprint // 4 + (2 << 20))
    vmem_limit = int(min(vmem_limit, physical - (8 << 20)))

    # Megacore sharding: only CORE_PARALLEL actually changes codegen; put it
    # on the larger grid axis on v7x (2 TensorCores per chip).
    if gen == "v7x" and hasattr(pltpu, "CORE_PARALLEL"):
        if grid[1] >= grid[0]:
            semantics = (pltpu.PARALLEL, pltpu.CORE_PARALLEL)
        else:
            semantics = (pltpu.CORE_PARALLEL, pltpu.PARALLEL)
    else:
        semantics = (pltpu.PARALLEL, pltpu.PARALLEL)

    cost = pl.CostEstimate(
        flops=int(8 * B * C * T),
        transcendentals=int(B * T),
        bytes_accessed=int(2 * B * C * T * itemsize + 2 * C * 4),
    )

    g2d = gamma.reshape(C, 1)
    b2d = beta.reshape(C, 1)

    kernel = functools.partial(_layernorm_kernel, eps=eps)

    return pl.pallas_call(
        kernel,
        out_shape=jax.ShapeDtypeStruct((B, C, T), x.dtype),
        grid=grid,
        in_specs=[
            pl.BlockSpec((nb, C, tile_t), lambda bi, ti: (bi, 0, ti)),
            pl.BlockSpec((C, 1), lambda bi, ti: (0, 0)),   # gamma: resident
            pl.BlockSpec((C, 1), lambda bi, ti: (0, 0)),   # beta:  resident
        ],
        out_specs=pl.BlockSpec((nb, C, tile_t), lambda bi, ti: (bi, 0, ti)),
        compiler_params=pltpu.CompilerParams(
            dimension_semantics=semantics,
            vmem_limit_bytes=vmem_limit,
        ),
        cost_estimate=cost,
    )(x, g2d, b2d)


# --------------------------------------------------------------------------
# Pure-JAX reference (mirrors F.layer_norm over the channel axis)
# --------------------------------------------------------------------------
def layer_norm_ref(x, gamma, beta, eps=1e-5):
    xf = x.astype(jnp.float32)
    mean = jnp.mean(xf, axis=1, keepdims=True)
    var = jnp.mean((xf - mean) ** 2, axis=1, keepdims=True)
    y = (xf - mean) * lax.rsqrt(var + eps) * gamma[None, :, None] \
        + beta[None, :, None]
    return y.astype(x.dtype)


if __name__ == "__main__":
    key = jax.random.PRNGKey(0)
    k1, k2, k3 = jax.random.split(key, 3)

    # Case 1: small shape consistent with the module (B=2, C=8, T=16);
    # gamma=ones, beta=zeros, matching nn.Parameter init.  Exercises the
    # batch-packing path (nb=2, full-T lane tile).
    B, C, T = 2, 8, 16
    x = jax.random.normal(k1, (B, C, T), dtype=jnp.float32)
    gamma = jnp.ones((C,), dtype=jnp.float32)
    beta = jnp.zeros((C,), dtype=jnp.float32)

    out = jax.block_until_ready(layer_norm_pallas(x, gamma, beta, eps=1e-5))
    ref = layer_norm_ref(x, gamma, beta, eps=1e-5)
    assert out.shape == (B, C, T)
    assert jnp.allclose(out, ref, atol=1e-5, rtol=1e-5)

    # Case 2: ragged lane tiling (T not a multiple of 128) with non-trivial
    # gamma/beta, exercising the masked-tail T tile and batch packing.
    B2, C2, T2 = 2, 12, 200
    x2 = jax.random.normal(k2, (B2, C2, T2), dtype=jnp.float32)
    g2 = 1.0 + 0.1 * jax.random.normal(k3, (C2,), dtype=jnp.float32)
    b2 = 0.1 * jnp.arange(C2, dtype=jnp.float32)

    out2 = jax.block_until_ready(layer_norm_pallas(x2, g2, b2, eps=1e-5))
    ref2 = layer_norm_ref(x2, g2, b2, eps=1e-5)
    assert out2.shape == (B2, C2, T2)
    assert jnp.allclose(out2, ref2, atol=1e-5, rtol=1e-5)

    print("KERNEL_OK")
</pallas_src>

<mosaic_0001>
module attributes {stable_mosaic.version = 11 : i64} {
  func.func @_layernorm_kernel(%arg0: i32, %arg1: i32, %arg2: memref<2x8x16xf32, #tpu.memory_space<vmem>>, %arg3: memref<8x1xf32, #tpu.memory_space<vmem>>, %arg4: memref<8x1xf32, #tpu.memory_space<vmem>>, %arg5: memref<2x8x16xf32, #tpu.memory_space<vmem>>) attributes {dimension_semantics = [#tpu.dimension_semantics<parallel>, #tpu.dimension_semantics<parallel>], iteration_bounds = array<i64: 1, 1>, scalar_prefetch = 0 : i64, scratch_operands = 0 : i64, tpu.core_type = #tpu.core_type<tc>, window_params = [{transform_indices = @transform_0, window_bounds = array<i64: 2, 8, 16>}, {pipeline_mode = #tpu.pipeline_mode<synchronous>, transform_indices = @transform_1, window_bounds = array<i64: 8, 1>}, {pipeline_mode = #tpu.pipeline_mode<synchronous>, transform_indices = @transform_2, window_bounds = array<i64: 8, 1>}, {transform_indices = @transform_3, window_bounds = array<i64: 2, 8, 16>}]} {
    %c0 = arith.constant 0 : index
    %c0_0 = arith.constant 0 : index
    %c0_1 = arith.constant 0 : index
    %0 = vector.load %arg2[%c0, %c0_0, %c0_1] : memref<2x8x16xf32, #tpu.memory_space<vmem>>, vector<2x8x16xf32>
    %c0_2 = arith.constant 0 : index
    %c0_3 = arith.constant 0 : index
    %1 = vector.load %arg3[%c0_2, %c0_3] : memref<8x1xf32, #tpu.memory_space<vmem>>, vector<8x1xf32>
    %2 = vector.shape_cast %1 : vector<8x1xf32> to vector<1x8x1xf32>
    %c0_4 = arith.constant 0 : index
    %c0_5 = arith.constant 0 : index
    %3 = vector.load %arg4[%c0_4, %c0_5] : memref<8x1xf32, #tpu.memory_space<vmem>>, vector<8x1xf32>
    %4 = vector.shape_cast %3 : vector<8x1xf32> to vector<1x8x1xf32>
    %cst = arith.constant dense<0.000000e+00> : vector<2x16xf32>
    %5 = vector.multi_reduction <add>, %0, %cst [1] : vector<2x8x16xf32> to vector<2x16xf32>
    %6 = vector.shape_cast %5 : vector<2x16xf32> to vector<2x1x16xf32>
    %cst_6 = arith.constant 8.000000e+00 : f32
    %7 = vector.broadcast %cst_6 : f32 to vector<2x1x16xf32>
    %8 = arith.divf %6, %7 : vector<2x1x16xf32>
    %9 = vector.broadcast %8 : vector<2x1x16xf32> to vector<2x8x16xf32>
    %10 = arith.subf %0, %9 : vector<2x8x16xf32>
    %11 = arith.mulf %10, %10 : vector<2x8x16xf32>
    %cst_7 = arith.constant dense<0.000000e+00> : vector<2x16xf32>
    %12 = vector.multi_reduction <add>, %11, %cst_7 [1] : vector<2x8x16xf32> to vector<2x16xf32>
    %13 = vector.shape_cast %12 : vector<2x16xf32> to vector<2x1x16xf32>
    %cst_8 = arith.constant 8.000000e+00 : f32
    %14 = vector.broadcast %cst_8 : f32 to vector<2x1x16xf32>
    %15 = arith.divf %13, %14 : vector<2x1x16xf32>
    %cst_9 = arith.constant 9.99999974E-6 : f32
    %16 = vector.broadcast %cst_9 : f32 to vector<2x1x16xf32>
    %17 = arith.addf %15, %16 : vector<2x1x16xf32>
    %18 = math.rsqrt %17 : vector<2x1x16xf32>
    %19 = vector.broadcast %18 : vector<2x1x16xf32> to vector<2x8x16xf32>
    %20 = arith.mulf %10, %19 : vector<2x8x16xf32>
    %21 = vector.broadcast %2 : vector<1x8x1xf32> to vector<2x8x16xf32>
    %22 = arith.mulf %20, %21 : vector<2x8x16xf32>
    %23 = vector.broadcast %4 : vector<1x8x1xf32> to vector<2x8x16xf32>
    %24 = arith.addf %22, %23 : vector<2x8x16xf32>
    %c0_10 = arith.constant 0 : index
    %c0_11 = arith.constant 0 : index
    %c0_12 = arith.constant 0 : index
    %25 = vector.load %arg5[%c0_10, %c0_11, %c0_12] : memref<2x8x16xf32, #tpu.memory_space<vmem>>, vector<2x8x16xf32>
    tpu.vector_store %arg5[%c0_10, %c0_11, %c0_12], %24 {strides = array<i32>} : memref<2x8x16xf32, #tpu.memory_space<vmem>>, vector<2x8x16xf32>,
    return
  }
  func.func @transform_0(%arg0: i32, %arg1: i32) -> (i32, i32, i32) {
    %c0_i32 = arith.constant 0 : i32
    %c0_i32_0 = arith.constant 0 : i32
    return %arg0, %c0_i32, %arg1 : i32, i32, i32
  }
  func.func @transform_1(%arg0: i32, %arg1: i32) -> (i32, i32) {
    %c0_i32 = arith.constant 0 : i32
    %c0_i32_0 = arith.constant 0 : i32
    %c0_i32_1 = arith.constant 0 : i32
    return %c0_i32, %c0_i32_0 : i32, i32
  }
  func.func @transform_2(%arg0: i32, %arg1: i32) -> (i32, i32) {
    %c0_i32 = arith.constant 0 : i32
    %c0_i32_0 = arith.constant 0 : i32
    %c0_i32_1 = arith.constant 0 : i32
    return %c0_i32, %c0_i32_0 : i32, i32
  }
  func.func @transform_3(%arg0: i32, %arg1: i32) -> (i32, i32, i32) {
    %c0_i32 = arith.constant 0 : i32
    %c0_i32_0 = arith.constant 0 : i32
    return %arg0, %c0_i32, %arg1 : i32, i32, i32
  }
}

</mosaic_0001>

<llo_original>
// kernel: tpu_custom_call.1
$region0: #{tpu_custom_call.1}
  #allocation0 [shape = 'u32[]', space=smem, size = 0x4, offset = 0x4, fixed_abs, tag = 'smem constant byte address 0x4 - core index']
  #allocation1 [shape = 'u32[144,128]{1,0:T(1,128)}', space=vmem, size = 0x12000, scoped, tag = 'internal scratch']
  %s0 = inlined_call_operand.vmem [shape: f32[2,8,16], index: 0, kind: input, shape index: {}]
  %s1 = inlined_call_operand.vmem [shape: f32[8,1], index: 1, kind: input, shape index: {}]
  %s2 = inlined_call_operand.vmem [shape: f32[8,1], index: 2, kind: input, shape index: {}]
  %s3 = inlined_call_operand.hbm [shape: f32[2,8,16], index: 3, kind: output, shape index: {}]
  %s4 = sld [smem:[#allocation0]]
  $region22: #{tpu_custom_call.1} parent=0
    _
  %s6 = ssub.s32 1, %s4
  %s7 = scalar_select 0, %s6, %s4
  $region1: #{tpu_custom_call.1} parent=0
    #allocation2 [shape = 'u8[8192]{0}', space=vmem, size = 0x2000, scoped, tag = 'output window, operand 0, single buffered']
    #allocation3 [shape = 's32[1]{0}', space=sflag, size = 0x4, scoped, tag = 'scoped memory for tpu_custom_call.1']
    %8 = vsyncpa [#allocation3], 0
    // Predicated region
    $region2: #{tpu_custom_call.1} parent=1 // pred_check
      _
    $region3: #{tpu_custom_call.1} parent=1 // pred_check_branch
      %10 = sbr.rel (0) target = $region5
    $region4: #{tpu_custom_call.1} parent=1 // pred_region
      _
    $region5: #{tpu_custom_call.1} parent=1 // pred_fallthru
      _
    // Predicated region
    $region6: #{tpu_custom_call.1} parent=1 // pred_check
      _
    $region7: #{tpu_custom_call.1} parent=1 // pred_check_branch
      %12 = sbr.rel (0) target = $region9
    $region8: #{tpu_custom_call.1} parent=1 // pred_region
      _
    $region9: #{tpu_custom_call.1} parent=1 // pred_fallthru
      _
    // Predicated region
    $region10: #{tpu_custom_call.1} parent=1 // pred_check
      _
    $region11: #{tpu_custom_call.1} parent=1 // pred_check_branch
      %14 = sbr.rel (0) target = $region13
    $region12: #{tpu_custom_call.1} parent=1 // pred_region
      _
    $region13: #{tpu_custom_call.1} parent=1 // pred_fallthru
      _
    %v15 = vld [vmem:[%s0] sm:$0xff]
    %v16 = vld [vmem:[%s0 + $0x8] sm:$0xff]
    %v17 = vld [vmem:[%s1] sm:$0xff]
    %v18 = vld [vmem:[%s2] sm:$0xff]
    %vm19 = vcmask 130048
    %v20 = vsel %vm19, %v15, 0.0
    %v21 = vrot.slane %v20, 4
    %v22 = vadd.f32 %v20, %v21
    %v23 = vrot.slane %v22, 2
    %v24 = vadd.f32 %v22, %v23
    %v25 = vrot.slane %v24, 1
    %v26 = vadd.f32 %v24, %v25
    %v27 = vsel %vm19, %v16, 0.0
    %v28 = vrot.slane %v27, 4
    %v29 = vadd.f32 %v27, %v28
    %v30 = vrot.slane %v29, 2
    %v31 = vadd.f32 %v29, %v30
    %v32 = vrot.slane %v31, 1
    %v33 = vadd.f32 %v31, %v32
    %v34 = vrcp.pop 8.0
    %v35 = vmul.f32 %v26, %v34
    %v36 = vmul.f32 %v33, %v34
    %v37 = vsub.f32 %v15, %v35
    %v38 = vsub.f32 %v16, %v36
    %v39 = vmul.f32 %v37, %v37
    %v40 = vmul.f32 %v38, %v38
    %v41 = vsel %vm19, %v39, 0.0
    %v42 = vrot.slane %v41, 4
    %v43 = vadd.f32 %v41, %v42
    %v44 = vrot.slane %v43, 2
    %v45 = vadd.f32 %v43, %v44
    %v46 = vrot.slane %v45, 1
    %v47 = vadd.f32 %v45, %v46
    %v48 = vsel %vm19, %v40, 0.0
    %v49 = vrot.slane %v48, 4
    %v50 = vadd.f32 %v48, %v49
    %v51 = vrot.slane %v50, 2
    %v52 = vadd.f32 %v50, %v51
    %v53 = vrot.slane %v52, 1
    %v54 = vadd.f32 %v52, %v53
    %v55 = vmul.f32 %v47, %v34
    %v56 = vmul.f32 %v54, %v34
    %v57 = vadd.f32 %v55, 1e-05
    %v58 = vadd.f32 %v56, 1e-05
    %v59 = vrsqrt.pop %v57
    %v60 = vrsqrt.pop %v58
    %v61 = vmul.f32 %v37, %v59
    %v62 = vmul.f32 %v38, %v60
    %64 = vset.pattern.permute.xlu0 0
    %65 = vperm.xlu0 %64, %v17
    %v66 = vpop.permute.xlu0 %65
    %v68 = vmul.f32 %v61, %v66
    %v69 = vmul.f32 %v62, %v66
    %71 = vset.pattern.permute.xlu0 0
    %72 = vperm.xlu0 %71, %v18
    %v73 = vpop.permute.xlu0 %72
    %v75 = vadd.f32 %v68, %v73
    %v76 = vadd.f32 %v69, %v73
    %77 = vst.msk [vmem:[#allocation2] sm:$0xff] %vm19, %v75
    %78 = vst.msk [vmem:[#allocation2 + $0x8] sm:$0xff] %vm19, %v76
    // Predicated region
    $region14: #{tpu_custom_call.1} parent=1 // pred_check
      _
    $region15: #{tpu_custom_call.1} parent=1 // pred_check_branch
      %80 = sbr.rel (0) target = $region17
    $region16: #{tpu_custom_call.1} parent=1 // pred_region
      %s82 = ssub.s32 256, 256
      %83 = vsyncadd [#allocation3], %s82
      %s84 = sshll.u32 [#allocation2], 4
      %s85 = int_to_ptr.vmem [resolvable:$true] %s84
      %90 = dma.vmem_to_hbm [thread:$0]  %s85, 256, %s3, [#allocation3], 128, 128, 8
    $region17: #{tpu_custom_call.1} parent=1 // pred_fallthru
      _
    // Predicated region
    $region18: #{tpu_custom_call.1} parent=1 // pred_check
      _
    $region19: #{tpu_custom_call.1} parent=1 // pred_check_branch
      %92 = sbr.rel (0) target = $region21
    $region20: #{tpu_custom_call.1} parent=1 // pred_region
      %93 = dma.done [#allocation3], 256
    $region21: #{tpu_custom_call.1} parent=1 // pred_fallthru
      _
    %94 = vsyncpa [#allocation3], 1

</llo_original>
